<compile_context>
chip_gen: v7x
topology: tpu7x:2x2x1
jax: 0.10.0
libtpu: 0.0.40
codegen_flags: <defaults>
</compile_context>

<pallas_src>
import functools
import math

import jax
import jax.numpy as jnp
import numpy as np
from jax.experimental import pallas as pl
from jax.experimental.pallas import tpu as pltpu


def _dwconv_kernel(x_ref, w_ref, o_ref, *, NB, K, Cp, Ho, Wo, TH):
    """Depthwise 2-D conv, channel-innermost packed layout, NB images per grid step.

    x_ref : (NB, Hp, Wp*Cp)  inputs already zero-padded along H, W and channel
    w_ref : (K*K, Wo*Cp)     per-tap weight rows, pre-tiled over Wo (lane-dense)
    o_ref : (NB, Ho, Wo*Cp)  lane-dense packed output
    """
    lane = Wo * Cp
    w = w_ref[...].astype(jnp.float32)                 # (K*K, lane), loaded & cast once
    for b in range(NB):                                # NB is a small static constant
        xfull = x_ref[b]                               # load padded image once
        # K channel-shifted windows derived from the in-register value (no VMEM re-loads);
        # cast once per kw, not per tap.
        cols = [xfull[:, kw * Cp: kw * Cp + lane].astype(jnp.float32) for kw in range(K)]
        for h0 in range(0, Ho, TH):                    # bound accumulator to <= TH rows
            th = min(TH, Ho - h0)
            acc = jnp.zeros((th, lane), jnp.float32)
            for kw in range(K):
                col = cols[kw]
                for kh in range(K):                    # sublane shifts reuse the same col
                    acc = acc + col[h0 + kh: h0 + kh + th, :] * w[kh * K + kw]
            o_ref[b, h0:h0 + th, :] = acc.astype(o_ref.dtype)


def depthwise_conv2d(x_nchw, w_kkc, padding):
    """DepthwiseConv2d.forward: NCHW in, NCHW out, stride 1, no bias, groups = C.

    x_nchw : (N, C, H, W)
    w_kkc  : (K, K, C)   (== PyTorch weight of shape (C, 1, K, K) transposed)
    """
    N, C, H, W = x_nchw.shape
    K = int(w_kkc.shape[0])
    pad = int(padding)
    Hp, Wp = H + 2 * pad, W + 2 * pad
    Ho, Wo = Hp - K + 1, Wp - K + 1

    # Channel padding so the packed lane width Wo*Cp is a multiple of 128
    # (unmasked full-width vector stores), unless the blow-up would be silly.
    cmul = 128 // math.gcd(Wo, 128)
    Cp = -(-C // cmul) * cmul
    if Cp > max(2 * C, C + 8):
        Cp = C                       # accept masked stores rather than inflating HBM bytes

    # Batch grouping: as few grid steps as possible (amortize ~0.35 us/step on single-TC
    # v5e/v6e) while keeping >= 2 parallel steps when N >= 2 so both v7x TensorCores get
    # work. Cap the per-step input block at ~4 MiB so double-buffering stays well inside
    # every generation's scoped-VMEM default (v7x has only 64 MiB physical VMEM).
    in_block_bytes = Hp * Wp * Cp * x_nchw.dtype.itemsize
    nb_cap = max(1, (4 << 20) // in_block_bytes)
    g_target = 2 if N >= 2 else 1
    NB = max(1, min(-(-N // g_target), nb_cap))
    G = -(-N // NB)
    Npad = G * NB

    # Single fused wrapper-side repack: NCHW -> NHWC, zero-pad batch/H/W/channel, then
    # flatten to channel-innermost (Npad, Hp, Wp*Cp). H padding lives here now, so the
    # kernel needs no VMEM pad scratch.
    # TODO(synk): keep this packed layout canonical across adjacent layers to avoid
    # paying the NCHW <-> packed transposes (2x extra HBM traffic) per layer.
    x_nhwc = jnp.transpose(x_nchw, (0, 2, 3, 1))
    x_packed = jnp.pad(
        x_nhwc, ((0, Npad - N), (pad, pad), (pad, pad), (0, Cp - C))
    ).reshape(Npad, Hp, Wp * Cp)

    # Hoist the per-tap weight broadcast out of the kernel: (K, K, C) -> (K*K, Wo*Cp).
    w_pad = jnp.pad(w_kkc, ((0, 0), (0, 0), (0, Cp - C)))
    w_rows = jnp.tile(w_pad.reshape(K * K, 1, Cp), (1, Wo, 1)).reshape(K * K, Wo * Cp)

    TH = Ho if Ho <= 16 else 16      # accumulator row-tile; keeps acc a handful of vregs
    kernel = functools.partial(_dwconv_kernel, NB=NB, K=K, Cp=Cp, Ho=Ho, Wo=Wo, TH=TH)
    out_packed = pl.pallas_call(
        kernel,
        out_shape=jax.ShapeDtypeStruct((Npad, Ho, Wo * Cp), x_nchw.dtype),
        grid=(G,),
        in_specs=[
            pl.BlockSpec((NB, Hp, Wp * Cp), lambda g: (g, 0, 0)),
            pl.BlockSpec((K * K, Wo * Cp), lambda g: (0, 0)),
        ],
        out_specs=pl.BlockSpec((NB, Ho, Wo * Cp), lambda g: (g, 0, 0)),
        compiler_params=pltpu.CompilerParams(dimension_semantics=("parallel",)),
    )(x_packed, w_rows)

    # Unpack back to the PyTorch layout and drop batch/channel padding.
    out = out_packed[:N].reshape(N, Ho, Wo, Cp)[..., :C]
    return jnp.transpose(out, (0, 3, 1, 2))


def depthwise_conv2d_reference(x_nchw, w_kkc, padding):
    """Pure-JAX f32 reference: explicit tap-sum depthwise conv in NCHW."""
    N, C, H, W = x_nchw.shape
    K = int(w_kkc.shape[0])
    pad = int(padding)
    xp = jnp.pad(x_nchw, ((0, 0), (0, 0), (pad, pad), (pad, pad)))
    Ho, Wo = H + 2 * pad - K + 1, W + 2 * pad - K + 1
    out = jnp.zeros((N, C, Ho, Wo), jnp.float32)
    for kh in range(K):
        for kw in range(K):
            out = out + xp[:, :, kh:kh + Ho, kw:kw + Wo] * w_kkc[kh, kw][None, :, None, None]
    return out.astype(x_nchw.dtype)


if __name__ == "__main__":
    key = jax.random.PRNGKey(0)
    # (N, in_planes, H, W, kernel, padding) -- out_planes is unused by the module.
    configs = [
        (2, 8, 16, 16, 3, 1),   # 'same' 3x3; Wo*Cp = 128 -> exactly one full lane width
        (2, 4, 16, 16, 5, 2),   # 'same' 5x5; exercises channel padding (C=4 -> Cp=8)
        (2, 8, 16, 16, 1, 0),   # 1x1, no padding
        (1, 8, 16, 16, 3, 1),   # N=1, single grid step path
    ]
    for (N, C, H, W, K, pad) in configs:
        key, kx, kw = jax.random.split(key, 3)
        x = jax.random.normal(kx, (N, C, H, W), jnp.float32)
        w = 0.1 * jax.random.normal(kw, (K, K, C), jnp.float32)

        out = jax.block_until_ready(depthwise_conv2d(x, w, pad))
        ref = jax.block_until_ready(depthwise_conv2d_reference(x, w, pad))
        assert out.shape == ref.shape == (N, C, H + 2 * pad - K + 1, W + 2 * pad - K + 1), (
            out.shape, ref.shape)
        np.testing.assert_allclose(np.asarray(out), np.asarray(ref), rtol=1e-5, atol=1e-5)
    print("KERNEL_OK")
</pallas_src>

<mosaic_0001>
module attributes {stable_mosaic.version = 11 : i64} {
  func.func @_dwconv_kernel(%arg0: i32, %arg1: memref<1x18x144xf32, #tpu.memory_space<vmem>>, %arg2: memref<9x128xf32, #tpu.memory_space<vmem>>, %arg3: memref<1x16x128xf32, #tpu.memory_space<vmem>>) attributes {dimension_semantics = [#tpu.dimension_semantics<parallel>], iteration_bounds = array<i64: 2>, scalar_prefetch = 0 : i64, scratch_operands = 0 : i64, tpu.core_type = #tpu.core_type<tc>, window_params = [{transform_indices = @transform_0, window_bounds = array<i64: 1, 18, 144>}, {pipeline_mode = #tpu.pipeline_mode<synchronous>, transform_indices = @transform_1, window_bounds = array<i64: 9, 128>}, {transform_indices = @transform_2, window_bounds = array<i64: 1, 16, 128>}]} {
    %c0 = arith.constant 0 : index
    %c0_0 = arith.constant 0 : index
    %0 = vector.load %arg2[%c0, %c0_0] : memref<9x128xf32, #tpu.memory_space<vmem>>, vector<9x128xf32>
    %c0_1 = arith.constant 0 : index
    %c0_2 = arith.constant 0 : index
    %c0_3 = arith.constant 0 : index
    %1 = vector.load %arg1[%c0_1, %c0_2, %c0_3] : memref<1x18x144xf32, #tpu.memory_space<vmem>>, vector<1x18x144xf32>
    %2 = vector.shape_cast %1 : vector<1x18x144xf32> to vector<18x144xf32>
    %3 = vector.extract_strided_slice %2 {offsets = [0, 0], sizes = [18, 128], strides = [1, 1]} : vector<18x144xf32> to vector<18x128xf32>
    %4 = vector.extract_strided_slice %2 {offsets = [0, 8], sizes = [18, 128], strides = [1, 1]} : vector<18x144xf32> to vector<18x128xf32>
    %5 = vector.extract_strided_slice %2 {offsets = [0, 16], sizes = [18, 128], strides = [1, 1]} : vector<18x144xf32> to vector<18x128xf32>
    %cst = arith.constant 0.000000e+00 : f32
    %6 = vector.broadcast %cst : f32 to vector<16x128xf32>
    %7 = vector.extract_strided_slice %3 {offsets = [0, 0], sizes = [16, 128], strides = [1, 1]} : vector<18x128xf32> to vector<16x128xf32>
    %8 = vector.extract_strided_slice %0 {offsets = [0, 0], sizes = [1, 128], strides = [1, 1]} : vector<9x128xf32> to vector<1x128xf32>
    %9 = vector.shape_cast %8 : vector<1x128xf32> to vector<128xf32>
    %10 = vector.shape_cast %9 : vector<128xf32> to vector<1x128xf32>
    %11 = vector.broadcast %10 : vector<1x128xf32> to vector<16x128xf32>
    %12 = arith.mulf %7, %11 : vector<16x128xf32>
    %13 = arith.addf %6, %12 : vector<16x128xf32>
    %14 = vector.extract_strided_slice %3 {offsets = [1, 0], sizes = [16, 128], strides = [1, 1]} : vector<18x128xf32> to vector<16x128xf32>
    %15 = vector.extract_strided_slice %0 {offsets = [3, 0], sizes = [1, 128], strides = [1, 1]} : vector<9x128xf32> to vector<1x128xf32>
    %16 = vector.shape_cast %15 : vector<1x128xf32> to vector<128xf32>
    %17 = vector.shape_cast %16 : vector<128xf32> to vector<1x128xf32>
    %18 = vector.broadcast %17 : vector<1x128xf32> to vector<16x128xf32>
    %19 = arith.mulf %14, %18 : vector<16x128xf32>
    %20 = arith.addf %13, %19 : vector<16x128xf32>
    %21 = vector.extract_strided_slice %3 {offsets = [2, 0], sizes = [16, 128], strides = [1, 1]} : vector<18x128xf32> to vector<16x128xf32>
    %22 = vector.extract_strided_slice %0 {offsets = [6, 0], sizes = [1, 128], strides = [1, 1]} : vector<9x128xf32> to vector<1x128xf32>
    %23 = vector.shape_cast %22 : vector<1x128xf32> to vector<128xf32>
    %24 = vector.shape_cast %23 : vector<128xf32> to vector<1x128xf32>
    %25 = vector.broadcast %24 : vector<1x128xf32> to vector<16x128xf32>
    %26 = arith.mulf %21, %25 : vector<16x128xf32>
    %27 = arith.addf %20, %26 : vector<16x128xf32>
    %28 = vector.extract_strided_slice %4 {offsets = [0, 0], sizes = [16, 128], strides = [1, 1]} : vector<18x128xf32> to vector<16x128xf32>
    %29 = vector.extract_strided_slice %0 {offsets = [1, 0], sizes = [1, 128], strides = [1, 1]} : vector<9x128xf32> to vector<1x128xf32>
    %30 = vector.shape_cast %29 : vector<1x128xf32> to vector<128xf32>
    %31 = vector.shape_cast %30 : vector<128xf32> to vector<1x128xf32>
    %32 = vector.broadcast %31 : vector<1x128xf32> to vector<16x128xf32>
    %33 = arith.mulf %28, %32 : vector<16x128xf32>
    %34 = arith.addf %27, %33 : vector<16x128xf32>
    %35 = vector.extract_strided_slice %4 {offsets = [1, 0], sizes = [16, 128], strides = [1, 1]} : vector<18x128xf32> to vector<16x128xf32>
    %36 = vector.extract_strided_slice %0 {offsets = [4, 0], sizes = [1, 128], strides = [1, 1]} : vector<9x128xf32> to vector<1x128xf32>
    %37 = vector.shape_cast %36 : vector<1x128xf32> to vector<128xf32>
    %38 = vector.shape_cast %37 : vector<128xf32> to vector<1x128xf32>
    %39 = vector.broadcast %38 : vector<1x128xf32> to vector<16x128xf32>
    %40 = arith.mulf %35, %39 : vector<16x128xf32>
    %41 = arith.addf %34, %40 : vector<16x128xf32>
    %42 = vector.extract_strided_slice %4 {offsets = [2, 0], sizes = [16, 128], strides = [1, 1]} : vector<18x128xf32> to vector<16x128xf32>
    %43 = vector.extract_strided_slice %0 {offsets = [7, 0], sizes = [1, 128], strides = [1, 1]} : vector<9x128xf32> to vector<1x128xf32>
    %44 = vector.shape_cast %43 : vector<1x128xf32> to vector<128xf32>
    %45 = vector.shape_cast %44 : vector<128xf32> to vector<1x128xf32>
    %46 = vector.broadcast %45 : vector<1x128xf32> to vector<16x128xf32>
    %47 = arith.mulf %42, %46 : vector<16x128xf32>
    %48 = arith.addf %41, %47 : vector<16x128xf32>
    %49 = vector.extract_strided_slice %5 {offsets = [0, 0], sizes = [16, 128], strides = [1, 1]} : vector<18x128xf32> to vector<16x128xf32>
    %50 = vector.extract_strided_slice %0 {offsets = [2, 0], sizes = [1, 128], strides = [1, 1]} : vector<9x128xf32> to vector<1x128xf32>
    %51 = vector.shape_cast %50 : vector<1x128xf32> to vector<128xf32>
    %52 = vector.shape_cast %51 : vector<128xf32> to vector<1x128xf32>
    %53 = vector.broadcast %52 : vector<1x128xf32> to vector<16x128xf32>
    %54 = arith.mulf %49, %53 : vector<16x128xf32>
    %55 = arith.addf %48, %54 : vector<16x128xf32>
    %56 = vector.extract_strided_slice %5 {offsets = [1, 0], sizes = [16, 128], strides = [1, 1]} : vector<18x128xf32> to vector<16x128xf32>
    %57 = vector.extract_strided_slice %0 {offsets = [5, 0], sizes = [1, 128], strides = [1, 1]} : vector<9x128xf32> to vector<1x128xf32>
    %58 = vector.shape_cast %57 : vector<1x128xf32> to vector<128xf32>
    %59 = vector.shape_cast %58 : vector<128xf32> to vector<1x128xf32>
    %60 = vector.broadcast %59 : vector<1x128xf32> to vector<16x128xf32>
    %61 = arith.mulf %56, %60 : vector<16x128xf32>
    %62 = arith.addf %55, %61 : vector<16x128xf32>
    %63 = vector.extract_strided_slice %5 {offsets = [2, 0], sizes = [16, 128], strides = [1, 1]} : vector<18x128xf32> to vector<16x128xf32>
    %64 = vector.extract_strided_slice %0 {offsets = [8, 0], sizes = [1, 128], strides = [1, 1]} : vector<9x128xf32> to vector<1x128xf32>
    %65 = vector.shape_cast %64 : vector<1x128xf32> to vector<128xf32>
    %66 = vector.shape_cast %65 : vector<128xf32> to vector<1x128xf32>
    %67 = vector.broadcast %66 : vector<1x128xf32> to vector<16x128xf32>
    %68 = arith.mulf %63, %67 : vector<16x128xf32>
    %69 = arith.addf %62, %68 : vector<16x128xf32>
    %c0_4 = arith.constant 0 : index
    %c0_5 = arith.constant 0 : index
    %c0_6 = arith.constant 0 : index
    %70 = vector.load %arg3[%c0_4, %c0_5, %c0_6] : memref<1x16x128xf32, #tpu.memory_space<vmem>>, vector<1x16x128xf32>
    %71 = vector.shape_cast %70 : vector<1x16x128xf32> to vector<16x128xf32>
    %72 = vector.shape_cast %69 : vector<16x128xf32> to vector<1x16x128xf32>
    tpu.vector_store %arg3[%c0_4, %c0_5, %c0_6], %72 {strides = array<i32>} : memref<1x16x128xf32, #tpu.memory_space<vmem>>, vector<1x16x128xf32>,
    return
  }
  func.func @transform_0(%arg0: i32) -> (i32, i32, i32) {
    %c0_i32 = arith.constant 0 : i32
    %c0_i32_0 = arith.constant 0 : i32
    %c0_i32_1 = arith.constant 0 : i32
    return %arg0, %c0_i32, %c0_i32_0 : i32, i32, i32
  }
  func.func @transform_1(%arg0: i32) -> (i32, i32) {
    %c0_i32 = arith.constant 0 : i32
    %c0_i32_0 = arith.constant 0 : i32
    %c0_i32_1 = arith.constant 0 : i32
    return %c0_i32, %c0_i32_0 : i32, i32
  }
  func.func @transform_2(%arg0: i32) -> (i32, i32, i32) {
    %c0_i32 = arith.constant 0 : i32
    %c0_i32_0 = arith.constant 0 : i32
    %c0_i32_1 = arith.constant 0 : i32
    return %arg0, %c0_i32, %c0_i32_0 : i32, i32, i32
  }
}

</mosaic_0001>

<llo_original>
// kernel: tpu_custom_call.1
$region0: #{tpu_custom_call.1}
  #allocation0 [shape = 'u32[]', space=smem, size = 0x4, offset = 0x4, fixed_abs, tag = 'smem constant byte address 0x4 - core index']
  #allocation1 [shape = 'u32[144,128]{1,0:T(1,128)}', space=vmem, size = 0x12000, scoped, tag = 'internal scratch']
  %s0 = inlined_call_operand.vmem [shape: f32[2,18,144], index: 0, kind: input, shape index: {}]
  %s1 = inlined_call_operand.vmem [shape: f32[9,128], index: 1, kind: input, shape index: {}]
  %s2 = inlined_call_operand.hbm [shape: f32[2,16,128], index: 2, kind: output, shape index: {}]
  %s3 = sld [smem:[#allocation0]]
  $region41: #{tpu_custom_call.1} parent=0
    _
  %s5 = ssub.s32 1, %s3
  %s6 = scalar_select 0, %s5, %s3
  $region1: #{tpu_custom_call.1} parent=0
    #allocation2 [shape = 'u8[16384]{0}', space=vmem, size = 0x4000, scoped, tag = 'output window, operand 0']
    #allocation3 [shape = 's32[2]{0}', space=sflag, size = 0x8, scoped, tag = 'scoped memory for tpu_custom_call.1']
    %7 = vsyncpa [#allocation3], 0
    %s8 = scalar_lea.sflag [#allocation3], 1
    %9 = vsyncpa %s8, 0
    loop: start=0, step=1, limit=4
    $region2: #{tpu_custom_call.1} parent=1 // loop_pre_header
      _
    $region3: #{tpu_custom_call.1} parent=1 // loop_header
      %s11 = sphi 0, %s15
      %p12 = scmp.ge.s32.totalorder %s11, 4
      %s21 = sphi 0, %s23
      %s24 = sphi 0, %s21
      %s25 = sphi 0, %s24
      %s41 = sphi 0, %s25
      %s45 = sphi 0, %s45
      %s47 = sphi 0, %s45
      %s48 = sphi 0, %s47
      %s62 = sphi 0, %s48
      %s68 = sphi 0, %s70
      %s71 = sphi 0, %s68
      %s72 = sphi 0, %s71
      %s88 = sphi 0, %s72
    $region4: #{tpu_custom_call.1} parent=1 // loop_header_branch
      %14 = sbr.rel (%p12) target = $region8
    $region5: #{tpu_custom_call.1} parent=1 // loop_body
      %s16 = ssub.s32 %s11, 1
      %s17 = ssub.s32 %s11, 2
      %s18 = sadd.s32 %s11, 1
      %s19 = ssub.s32 %s11, %s18
      %p20 = scmp.eq.s32.totalorder %s19, 0
      %s22 = sadd.s32 %s21, 1
      %s23 = scalar_select %p20, %s21, %s22
      %p26 = pneg %p20
      %p27 = scmp.eq.s32.totalorder %s11, 1
      %p28 = por %p26, %p27
      %p29 = scmp.ne.s32.totalorder %s21, %s24
      %p30 = scmp.eq.s32.totalorder %s11, 0
      %p31 = por %p29, %p30
      %p32 = scmp.ne.s32.totalorder %s21, %s24
      %p33 = scmp.eq.s32.totalorder %s16, 1
      %p34 = por %p32, %p33
      %p35 = scmp.ne.s32.totalorder %s24, %s25
      %p36 = scmp.eq.s32.totalorder %s16, 0
      %p37 = por %p35, %p36
      %p38 = scmp.ne.s32.totalorder %s24, %s25
      %p39 = scmp.eq.s32.totalorder %s17, 1
      %p40 = por %p38, %p39
      %p42 = scmp.ne.s32.totalorder %s25, %s41
      %p43 = scmp.eq.s32.totalorder %s17, 0
      %p44 = por %p42, %p43
      %s46 = sadd.s32 %s45, 1
      %p49 = scmp.eq.s32.totalorder %s11, 1
      %p50 = scmp.ne.s32.totalorder %s45, %s47
      %p51 = scmp.eq.s32.totalorder %s11, 0
      %p52 = por %p50, %p51
      %p53 = scmp.ne.s32.totalorder %s45, %s47
      %p54 = scmp.eq.s32.totalorder %s16, 1
      %p55 = por %p53, %p54
      %p56 = scmp.ne.s32.totalorder %s47, %s48
      %p57 = scmp.eq.s32.totalorder %s16, 0
      %p58 = por %p56, %p57
      %p59 = scmp.ne.s32.totalorder %s47, %s48
      %p60 = scmp.eq.s32.totalorder %s17, 1
      %p61 = por %p59, %p60
      %p63 = scmp.ne.s32.totalorder %s48, %s62
      %p64 = scmp.eq.s32.totalorder %s17, 0
      %p65 = por %p63, %p64
      %s66 = ssub.s32 %s11, %s18
      %p67 = scmp.eq.s32.totalorder %s66, 0
      %s69 = sadd.s32 %s68, 1
      %s70 = scalar_select %p67, %s68, %s69
      %p73 = pneg %p67
      %p74 = scmp.eq.s32.totalorder %s11, 1
      %p75 = por %p73, %p74
      %p76 = scmp.ne.s32.totalorder %s68, %s71
      %p77 = scmp.eq.s32.totalorder %s11, 0
      %p78 = por %p76, %p77
      %p79 = scmp.ne.s32.totalorder %s68, %s71
      %p80 = scmp.eq.s32.totalorder %s16, 1
      %p81 = por %p79, %p80
      %p82 = scmp.ne.s32.totalorder %s71, %s72
      %p83 = scmp.eq.s32.totalorder %s16, 0
      %p84 = por %p82, %p83
      %p85 = scmp.ne.s32.totalorder %s71, %s72
      %p86 = scmp.eq.s32.totalorder %s17, 1
      %p87 = por %p85, %p86
      %p89 = scmp.ne.s32.totalorder %s72, %s88
      %p90 = scmp.eq.s32.totalorder %s17, 0
      %p91 = por %p89, %p90
      %p92 = scmp.le.s32.totalorder 1, %s11
      %p93 = scmp.lt.s32.totalorder %s11, 3
      %p94 = pnand %p92, %p93
      %p95 = pneg %p94
      // Predicated region
      $region9: #{tpu_custom_call.1} parent=5 // pred_check
        _
      $region10: #{tpu_custom_call.1} parent=5 // pred_check_branch
        %97 = sbr.rel (%p94) target = $region12
      $region11: #{tpu_custom_call.1} parent=5 // pred_region
        %s98 = ssub.s32 %s11, 1
        // Predicated region
        $region13: #{tpu_custom_call.1} parent=11 // pred_check
          %p99 = pneg %p58
        $region14: #{tpu_custom_call.1} parent=11 // pred_check_branch
          %101 = sbr.rel (%p99) target = $region16
        $region15: #{tpu_custom_call.1} parent=11 // pred_region
          _
        $region16: #{tpu_custom_call.1} parent=11 // pred_fallthru
          _
      $region12: #{tpu_custom_call.1} parent=5 // pred_fallthru
        _
      %p102 = scmp.lt.s32.totalorder %s11, 2
      // Predicated region
      $region17: #{tpu_custom_call.1} parent=5 // pred_check
        %p103 = pneg %p102
      $region18: #{tpu_custom_call.1} parent=5 // pred_check_branch
        %105 = sbr.rel (%p103) target = $region20
      $region19: #{tpu_custom_call.1} parent=5 // pred_region
        // Predicated region
        $region21: #{tpu_custom_call.1} parent=19 // pred_check
          %p106 = pneg %p31
        $region22: #{tpu_custom_call.1} parent=19 // pred_check_branch
          %108 = sbr.rel (%p106) target = $region24
        $region23: #{tpu_custom_call.1} parent=19 // pred_region
          %p109 = scmp.lt.s32.totalorder %s11, 1
          %s110 = scalar_select %p109, %s11, 1
          %s111 = smul.addr %s110, 6
          %s112 = smul.addr %s111, 8
          %s113 = scalar_lea.vmem %s0, %s112
        $region24: #{tpu_custom_call.1} parent=19 // pred_fallthru
          _
      $region20: #{tpu_custom_call.1} parent=5 // pred_fallthru
        _
      %p114 = scmp.le.s32.totalorder 1, %s11
      %p115 = scmp.lt.s32.totalorder %s11, 3
      %p116 = pnand %p114, %p115
      %p117 = pneg %p116
      // Predicated region
      $region25: #{tpu_custom_call.1} parent=5 // pred_check
        _
      $region26: #{tpu_custom_call.1} parent=5 // pred_check_branch
        %119 = sbr.rel (%p116) target = $region28
      $region27: #{tpu_custom_call.1} parent=5 // pred_region
        %s120 = ssub.s32 %s11, 1
        %p121 = scmp.lt.s32.totalorder %s16, 1
        %s122 = scalar_select %p121, %s16, 1
        %s123 = smul.addr %s122, 6
        %s124 = smul.addr %s123, 8
        %s125 = scalar_lea.vmem %s0, %s124
        %p126 = pneg %p37
        %p127 = pneg %p34
        %p128 = pneg %p58
        %p129 = pneg %p55
        %p130 = pneg %p84
        %p131 = pneg %p81
        %s132 = sand.u32 %s71, 1
        %s133 = scalar_lea.sflag [#allocation3], %s132
        %s134 = sand.u32 %s71, 1
        %s135 = smul.addr %s134, 16
        %s136 = scalar_lea.vmem [#allocation2], %s135
        %p137 = scmp.lt.s32.totalorder %s16, 1
        %s138 = scalar_select %p137, %s16, 1
        %s139 = smul.addr %s138, 6
        %s140 = smul.addr %s139, 8
        %s141 = scalar_lea.vmem %s0, %s140
        %v142 = vld [vmem:[%s1] sm:$0xff]
        %v143 = vld [vmem:[%s1 + $0x8] sm:$0x1]
        %v144 = vld [vmem:[%s141] sm:$0xff]
        %v145 = vld [vmem:[%s141 + $0x8] sm:$0xff]
        %v146 = vld [vmem:[%s141 + $0x10] sm:$0xff]
        %v147 = vld [vmem:[%s141 + $0x18] sm:$0xff]
        %v148 = vld [vmem:[%s141 + $0x20] sm:$0x3]
        %v149 = vld [vmem:[%s141 + $0x28] sm:$0x3]
        %v150 = vlaneseq
        %v151 = vshrl.u32 %v150, 7
        %v152 = vsub.s32 0, %v151
        %v153 = vrot.slane %v142, %v152
        %v154 = vmul.f32 %v144, %v153
        %v155 = vmul.f32 %v146, %v153
        %v156 = vadd.f32 %v154, 0.0
        %v157 = vadd.f32 %v155, 0.0
        %v158 = vlaneseq
        %v159 = vshrl.u32 %v158, 7
        %v160 = vsub.s32 3, %v159
        %v161 = vrot.slane %v142, %v160
        %v162 = vmul.f32 %v144, %v161
        %v163 = vmul.f32 %v146, %v161
        %v164 = vmul.f32 %v148, %v161
        %vm168 = vcmask 1046528
        %v169 = vrot.slane %v162, 1
        %v170 = vrot.slane %v163, 1
        %v171 = vsel %vm168, %v169, %v170
        %v172 = vrot.slane %v164, 1
        %v173 = vsel %vm168, %v170, %v172
        %v176 = vadd.f32 %v156, %v171
        %v177 = vadd.f32 %v157, %v173
        %v178 = vlaneseq
        %v179 = vshrl.u32 %v178, 7
        %v180 = vsub.s32 6, %v179
        %v181 = vrot.slane %v142, %v180
        %v182 = vmul.f32 %v144, %v181
        %v183 = vmul.f32 %v146, %v181
        %v184 = vmul.f32 %v148, %v181
        %vm188 = vcmask 1045504
        %v189 = vrot.slane %v182, 2
        %v190 = vrot.slane %v183, 2
        %v191 = vsel %vm188, %v189, %v190
        %v192 = vrot.slane %v184, 2
        %v193 = vsel %vm188, %v190, %v192
        %v196 = vadd.f32 %v176, %v191
        %v197 = vadd.f32 %v177, %v193
        %v198 = vlaneseq
        %v199 = vshrl.u32 %v198, 7
        %v200 = vsub.s32 1, %v199
        %v201 = vrot.slane %v142, %v200
        %203 = vrot.lane.b32.xlu0 %v201, 8
        %v204 = vpop.permute.xlu0 %203
        %v206 = vmul.f32 %v144, %v204
        %v207 = vmul.f32 %v145, %v204
        %v208 = vmul.f32 %v146, %v204
        %v209 = vmul.f32 %v147, %v204
        %214 = vrot.lane.b32.xlu0 %v206, 120
        %v215 = vpop.permute.xlu0 %214
        %216 = vrot.lane.b32.xlu0 %v207, 120
        %v217 = vpop.permute.xlu0 %216
        %218 = vrot.lane.b32.xlu0 %v208, 120
        %v219 = vpop.permute.xlu0 %218
        %220 = vrot.lane.b32.xlu0 %v209, 120
        %v221 = vpop.permute.xlu0 %220
        %vm222 = vcmask 982016
        %v223 = vsel %vm222, %v215, %v217
        %v224 = vsel %vm222, %v219, %v221
        %v227 = vadd.f32 %v196, %v223
        %v228 = vadd.f32 %v197, %v224
        %v229 = vlaneseq
        %v230 = vshrl.u32 %v229, 7
        %v231 = vsub.s32 4, %v230
        %v232 = vrot.slane %v142, %v231
        %234 = vrot.lane.b32.xlu0 %v232, 8
        %v235 = vpop.permute.xlu0 %234
        %v237 = vmul.f32 %v144, %v235
        %v238 = vmul.f32 %v145, %v235
        %v239 = vmul.f32 %v146, %v235
        %v240 = vmul.f32 %v147, %v235
        %v241 = vmul.f32 %v148, %v235
        %v242 = vmul.f32 %v149, %v235
        %v249 = vrot.slane %v237, 1
        %v250 = vrot.slane %v239, 1
        %v251 = vsel %vm168, %v249, %v250
        %v252 = vrot.slane %v238, 1
        %v253 = vrot.slane %v240, 1
        %v254 = vsel %vm168, %v252, %v253
        %v255 = vrot.slane %v241, 1
        %v256 = vsel %vm168, %v250, %v255
        %v257 = vrot.slane %v242, 1
        %v258 = vsel %vm168, %v253, %v257
        %259 = vrot.lane.b32.xlu0 %v251, 120
        %v260 = vpop.permute.xlu0 %259
        %261 = vrot.lane.b32.xlu0 %v254, 120
        %v262 = vpop.permute.xlu0 %261
        %263 = vrot.lane.b32.xlu0 %v256, 120
        %v264 = vpop.permute.xlu0 %263
        %265 = vrot.lane.b32.xlu0 %v258, 120
        %v266 = vpop.permute.xlu0 %265
        %v267 = vsel %vm222, %v260, %v262
        %v268 = vsel %vm222, %v264, %v266
        %v271 = vadd.f32 %v227, %v267
        %v272 = vadd.f32 %v228, %v268
        %v273 = vlaneseq
        %v274 = vshrl.u32 %v273, 7
        %v275 = vsub.s32 7, %v274
        %v276 = vrot.slane %v142, %v275
        %278 = vrot.lane.b32.xlu0 %v276, 8
        %v279 = vpop.permute.xlu0 %278
        %v281 = vmul.f32 %v144, %v279
        %v282 = vmul.f32 %v145, %v279
        %v283 = vmul.f32 %v146, %v279
        %v284 = vmul.f32 %v147, %v279
        %v285 = vmul.f32 %v148, %v279
        %v286 = vmul.f32 %v149, %v279
        %v293 = vrot.slane %v281, 2
        %v294 = vrot.slane %v283, 2
        %v295 = vsel %vm188, %v293, %v294
        %v296 = vrot.slane %v282, 2
        %v297 = vrot.slane %v284, 2
        %v298 = vsel %vm188, %v296, %v297
        %v299 = vrot.slane %v285, 2
        %v300 = vsel %vm188, %v294, %v299
        %v301 = vrot.slane %v286, 2
        %v302 = vsel %vm188, %v297, %v301
        %303 = vrot.lane.b32.xlu0 %v295, 120
        %v304 = vpop.permute.xlu0 %303
        %305 = vrot.lane.b32.xlu0 %v298, 120
        %v306 = vpop.permute.xlu0 %305
        %307 = vrot.lane.b32.xlu0 %v300, 120
        %v308 = vpop.permute.xlu0 %307
        %309 = vrot.lane.b32.xlu0 %v302, 120
        %v310 = vpop.permute.xlu0 %309
        %v311 = vsel %vm222, %v304, %v306
        %v312 = vsel %vm222, %v308, %v310
        %v315 = vadd.f32 %v271, %v311
        %v316 = vadd.f32 %v272, %v312
        %v317 = vlaneseq
        %v318 = vshrl.u32 %v317, 7
        %v319 = vsub.s32 2, %v318
        %v320 = vrot.slane %v142, %v319
        %322 = vrot.lane.b32.xlu0 %v320, 16
        %v323 = vpop.permute.xlu0 %322
        %v325 = vmul.f32 %v144, %v323
        %v326 = vmul.f32 %v145, %v323
        %v327 = vmul.f32 %v146, %v323
        %v328 = vmul.f32 %v147, %v323
        %333 = vrot.lane.b32.xlu0 %v325, 112
        %v334 = vpop.permute.xlu0 %333
        %335 = vrot.lane.b32.xlu0 %v326, 112
        %v336 = vpop.permute.xlu0 %335
        %337 = vrot.lane.b32.xlu0 %v327, 112
        %v338 = vpop.permute.xlu0 %337
        %339 = vrot.lane.b32.xlu0 %v328, 112
        %v340 = vpop.permute.xlu0 %339
        %vm341 = vcmask 916480
        %v342 = vsel %vm341, %v334, %v336
        %v343 = vsel %vm341, %v338, %v340
        %v346 = vadd.f32 %v315, %v342
        %v347 = vadd.f32 %v316, %v343
        %v348 = vlaneseq
        %v349 = vshrl.u32 %v348, 7
        %v350 = vsub.s32 5, %v349
        %v351 = vrot.slane %v142, %v350
        %353 = vrot.lane.b32.xlu0 %v351, 16
        %v354 = vpop.permute.xlu0 %353
        %v356 = vmul.f32 %v144, %v354
        %v357 = vmul.f32 %v145, %v354
        %v358 = vmul.f32 %v146, %v354
        %v359 = vmul.f32 %v147, %v354
        %v360 = vmul.f32 %v148, %v354
        %v361 = vmul.f32 %v149, %v354
        %v368 = vrot.slane %v356, 1
        %v369 = vrot.slane %v358, 1
        %v370 = vsel %vm168, %v368, %v369
        %v371 = vrot.slane %v357, 1
        %v372 = vrot.slane %v359, 1
        %v373 = vsel %vm168, %v371, %v372
        %v374 = vrot.slane %v360, 1
        %v375 = vsel %vm168, %v369, %v374
        %v376 = vrot.slane %v361, 1
        %v377 = vsel %vm168, %v372, %v376
        %378 = vrot.lane.b32.xlu0 %v370, 112
        %v379 = vpop.permute.xlu0 %378
        %380 = vrot.lane.b32.xlu0 %v373, 112
        %v381 = vpop.permute.xlu0 %380
        %382 = vrot.lane.b32.xlu0 %v375, 112
        %v383 = vpop.permute.xlu0 %382
        %384 = vrot.lane.b32.xlu0 %v377, 112
        %v385 = vpop.permute.xlu0 %384
        %v386 = vsel %vm341, %v379, %v381
        %v387 = vsel %vm341, %v383, %v385
        %v390 = vadd.f32 %v346, %v386
        %v391 = vadd.f32 %v347, %v387
        %v392 = vlaneseq
        %v393 = vshrl.u32 %v392, 7
        %v394 = vsub.s32 0, %v393
        %v395 = vrot.slane %v143, %v394
        %397 = vrot.lane.b32.xlu0 %v395, 16
        %v398 = vpop.permute.xlu0 %397
        %v400 = vmul.f32 %v144, %v398
        %v401 = vmul.f32 %v145, %v398
        %v402 = vmul.f32 %v146, %v398
        %v403 = vmul.f32 %v147, %v398
        %v404 = vmul.f32 %v148, %v398
        %v405 = vmul.f32 %v149, %v398
        %v412 = vrot.slane %v400, 2
        %v413 = vrot.slane %v402, 2
        %v414 = vsel %vm188, %v412, %v413
        %v415 = vrot.slane %v401, 2
        %v416 = vrot.slane %v403, 2
        %v417 = vsel %vm188, %v415, %v416
        %v418 = vrot.slane %v404, 2
        %v419 = vsel %vm188, %v413, %v418
        %v420 = vrot.slane %v405, 2
        %v421 = vsel %vm188, %v416, %v420
        %422 = vrot.lane.b32.xlu0 %v414, 112
        %v423 = vpop.permute.xlu0 %422
        %424 = vrot.lane.b32.xlu0 %v417, 112
        %v425 = vpop.permute.xlu0 %424
        %426 = vrot.lane.b32.xlu0 %v419, 112
        %v427 = vpop.permute.xlu0 %426
        %428 = vrot.lane.b32.xlu0 %v421, 112
        %v429 = vpop.permute.xlu0 %428
        %v430 = vsel %vm341, %v423, %v425
        %v431 = vsel %vm341, %v427, %v429
        %v434 = vadd.f32 %v390, %v430
        %v435 = vadd.f32 %v391, %v431
        %436 = vst [vmem:[%s136] sm:$0xff] %v434
        %437 = vst [vmem:[%s136 + $0x8] sm:$0xff] %v435
        %s438 = sand.u32 %s71, 1
        %s439 = scalar_lea.sflag [#allocation3], %s438
        %s440 = sand.u32 %s71, 1
        %s441 = smul.addr %s440, 16
        %s442 = scalar_lea.vmem [#allocation2], %s441
        // Predicated region
        $region29: #{tpu_custom_call.1} parent=27 // pred_check
          %p443 = pneg %p81
        $region30: #{tpu_custom_call.1} parent=27 // pred_check_branch
          %445 = sbr.rel (%p443) target = $region32
        $region31: #{tpu_custom_call.1} parent=27 // pred_region
          %s447 = ssub.s32 256, 256
          %448 = vsyncadd %s439, %s447
          %s449 = smul.addr %s16, 2
          %s450 = smul.addr %s449, 128
          %s451 = scalar_lea.hbm %s2, %s450
          %s452 = sshll.u32 %s442, 4
          %s453 = int_to_ptr.vmem [resolvable:$true] %s452
          %458 = dma.vmem_to_hbm [thread:$0]  %s453, 256, %s451, %s439, 128, 128, 8
        $region32: #{tpu_custom_call.1} parent=27 // pred_fallthru
          _
      $region28: #{tpu_custom_call.1} parent=5 // pred_fallthru
        _
      %p459 = scmp.le.s32.totalorder 2, %s11
      // Predicated region
      $region33: #{tpu_custom_call.1} parent=5 // pred_check
        %p460 = pneg %p459
      $region34: #{tpu_custom_call.1} parent=5 // pred_check_branch
        %462 = sbr.rel (%p460) target = $region36
      $region35: #{tpu_custom_call.1} parent=5 // pred_region
        %s463 = ssub.s32 %s11, 2
        // Predicated region
        $region37: #{tpu_custom_call.1} parent=35 // pred_check
          %p464 = pneg %p87
        $region38: #{tpu_custom_call.1} parent=35 // pred_check_branch
          %466 = sbr.rel (%p464) target = $region40
        $region39: #{tpu_custom_call.1} parent=35 // pred_region
          %s467 = sand.u32 %s72, 1
          %s468 = scalar_lea.sflag [#allocation3], %s467
          %s469 = sand.u32 %s72, 1
          %s470 = smul.addr %s469, 16
          %s471 = scalar_lea.vmem [#allocation2], %s470
          %472 = dma.done %s468, 256
        $region40: #{tpu_custom_call.1} parent=35 // pred_fallthru
          _
      $region36: #{tpu_custom_call.1} parent=5 // pred_fallthru
        _
    $region6: #{tpu_custom_call.1} parent=1 // loop_footer
      %s15 = sadd.s32 1, %s11
    $region7: #{tpu_custom_call.1} parent=1 // loop_footer_branch
      %10 = sbr.rel target = $region3
    $region8: #{tpu_custom_call.1} parent=1 // loop_exit
      _
    %473 = vsyncpa [#allocation3], 1
    %s474 = scalar_lea.sflag [#allocation3], 1
    %475 = vsyncpa %s474, 1

</llo_original>
